<compile_context>
chip_gen: v5e
topology: v5e:2x2
jax: 0.10.0
libtpu: 0.0.40
codegen_flags: <defaults>
</compile_context>

<pallas_src>
import math

import jax
import jax.numpy as jnp
from jax.experimental import pallas as pl
from jax.experimental.pallas import tpu as pltpu


def _select_timestep_kernel(dist_ref, x_hbm, o_hbm, sem):
    """x_hbm: (B, T, F) in HBM; o_hbm: (B, 1, F) in HBM.

    One strided DMA copies x[:, d:d+1, :] -> o.  The TensorCore only builds
    the descriptor and waits; the DMA engine does the whole gather.
    """
    d = dist_ref[0]
    cp = pltpu.make_async_copy(x_hbm.at[:, pl.ds(d, 1), :], o_hbm, sem)
    cp.start()
    cp.wait()


def init_params():
    # simple.mlp(1) from __init__ is never used in forward(); synthesize a
    # deterministic placeholder so the "module" is fully parameterized.
    # TODO(synk): `simple.mlp(1)` definition is external; exact hidden sizes unknown.
    key = jax.random.PRNGKey(42)
    return {
        "mlp_w": jax.random.normal(key, (1, 1), dtype=jnp.float32),
        "mlp_b": jnp.zeros((1,), dtype=jnp.float32),
    }


def dummy_net_ts_forward(inputs, dist, params=None):
    """Mirror of DummyNetTS.forward: (x, lr) -> x[:, dist]."""
    x, lr = inputs          # lr is unpacked and ignored, exactly like the torch code
    del lr, params

    B, T = x.shape[0], x.shape[1]
    rest = tuple(x.shape[2:])
    F = int(math.prod(rest)) if rest else 1

    # Contiguous (free) reshape so the kernel sees a plain (B, T, F) slab.
    # No padding, no full-tensor copies, works for any F / dtype.
    x3 = x.reshape(B, T, F)

    # Clamp dist so the DMA can never generate an out-of-bounds read.
    dist_arr = jnp.clip(jnp.asarray(dist, jnp.int32), 0, T - 1).reshape(1)

    itemsize = jnp.dtype(x.dtype).itemsize

    out = pl.pallas_call(
        _select_timestep_kernel,
        out_shape=jax.ShapeDtypeStruct((B, 1, F), x.dtype),
        grid_spec=pltpu.PrefetchScalarGridSpec(
            num_scalar_prefetch=1,
            grid=(1,),
            in_specs=[pl.BlockSpec(memory_space=pl.ANY)],   # x stays in HBM
            out_specs=pl.BlockSpec(memory_space=pl.ANY),    # written by the DMA
            scratch_shapes=[pltpu.SemaphoreType.DMA(())],
        ),
        compiler_params=pltpu.CompilerParams(
            dimension_semantics=("arbitrary",),
        ),
        cost_estimate=pl.CostEstimate(
            flops=0,
            transcendentals=0,
            bytes_accessed=2 * B * F * itemsize,
        ),
    )(dist_arr, x3)

    # Free, contiguous reshape back to x[:, dist]'s natural shape (B, *rest).
    return out.reshape((B,) + rest)


if __name__ == "__main__":
    B, T, F = 2, 8, 128     # small shapes: batch=2, seq=8, features=128
    dist = 3

    key = jax.random.PRNGKey(0)
    kx, klr = jax.random.split(key)
    x = jax.random.normal(kx, (B, T, F), dtype=jnp.float32)
    lr = jax.random.uniform(klr, (), dtype=jnp.float32)   # unused, as in torch

    params = init_params()

    out = dummy_net_ts_forward((x, lr), dist, params)
    out = jax.block_until_ready(out)

    ref = x[:, dist]
    assert out.shape == (B, F), out.shape
    assert jnp.allclose(out, ref), "mismatch vs reference x[:, dist]"

    print("KERNEL_OK")
</pallas_src>

<mosaic_0001>
module attributes {stable_mosaic.version = 11 : i64} {
  func.func @_select_timestep_kernel(%arg0: i32, %arg1: memref<1xi32, #tpu.memory_space<smem>>, %arg2: memref<2x8x128xf32, #tpu.memory_space<any>>, %arg3: memref<2x1x128xf32, #tpu.memory_space<any>>, %arg4: memref<!tpu.dma_semaphore, #tpu.memory_space<semaphore_mem>>) attributes {dimension_semantics = [#tpu.dimension_semantics<arbitrary>], iteration_bounds = array<i64: 1>, scalar_prefetch = 1 : i64, scratch_operands = 1 : i64, tpu.core_type = #tpu.core_type<tc>, window_params = [{}, {}]} {
    %c0 = arith.constant 0 : index
    %0 = memref.load %arg1[%c0] : memref<1xi32, #tpu.memory_space<smem>>
    %c0_i32 = arith.constant 0 : i32
    %c0_i32_0 = arith.constant 0 : i32
    %1 = tpu.memref_slice %arg2[%c0_i32, %0, %c0_i32_0] : memref<2x8x128xf32, #tpu.memory_space<any>> -> memref<2x1x128xf32, #tpu.memory_space<any>>
    tpu.enqueue_dma source(%1 : memref<2x1x128xf32, #tpu.memory_space<any>>) target(%arg3 : memref<2x1x128xf32, #tpu.memory_space<any>>) target_semaphore(%arg4 : memref<!tpu.dma_semaphore, #tpu.memory_space<semaphore_mem>>)
    %c0_i32_1 = arith.constant 0 : i32
    %c0_i32_2 = arith.constant 0 : i32
    %2 = tpu.memref_slice %arg2[%c0_i32_1, %0, %c0_i32_2] : memref<2x8x128xf32, #tpu.memory_space<any>> -> memref<2x1x128xf32, #tpu.memory_space<any>>
    tpu.wait_dma2 semaphore(%arg4 : memref<!tpu.dma_semaphore, #tpu.memory_space<semaphore_mem>>) src(%2 : memref<2x1x128xf32, #tpu.memory_space<any>>) dst(%arg3 : memref<2x1x128xf32, #tpu.memory_space<any>>)
    return
  }
}

</mosaic_0001>

<llo_original>
// kernel: tpu_custom_call.1
$region0: #{tpu_custom_call.1}
  #allocation0 [shape = 'u32[]', space=smem, size = 0x4, offset = 0x4, fixed_abs, tag = 'smem constant byte address 0x4 - core index']
  #allocation1 [shape = 'u32[72,128]{1,0:T(1,128)}', space=vmem, size = 0x9000, scoped, tag = 'internal scratch']
  #allocation2 [shape = 's32[1]{0}', space=sflag, size = 0x4, scoped, tag = 'scratch operand']
  #allocation3 [shape = 's32[1]{0}', space=sflag, size = 0x4, scoped, tag = 'scoped memory for tpu_custom_call.1']
  #allocation4 [shape = 's32[1]{0:T(128)S(6)}', space=smem, size = 0x200, scoped, tag = 'prefetched SMEM operand 0']
  #allocation5 [shape = 's32[]', space=sflag, size = 0x4, offset = 0, fixed_abs, tag = 'sflag constant byte address 0x0 - dummy sync flag']
  %s0 = inlined_call_operand.<no memory space> [shape: s32[1], index: 0, kind: input, shape index: {}]
  %s1 = inlined_call_operand.hbm [shape: f32[2,8,128], index: 1, kind: input, shape index: {}]
  %s2 = inlined_call_operand.hbm [shape: f32[2,1,128], index: 2, kind: output, shape index: {}]
  %s3 = sld [smem:[#allocation0]]
  $region2: #{tpu_custom_call.1} parent=0
    _
  %s5 = ssub.s32 1, %s3
  %s6 = scalar_select 0, %s5, %s3
  %7 = sst [smem:[#allocation4]] %s0
  $region1: #{tpu_custom_call.1} parent=0
    #allocation6 [shape = 'u32[3]{0}', space=smem, size = 0xc, scoped, tag = 'DMA stride descriptor']
    %s8 = sld [smem:[#allocation4]]
    %s9 = scalar_lea.hbm %s1, %s8
    %s11 = sshll.u32 1, 14
    %s12 = sxor.u32 4294967295, %s11
    %s14 = sshll.u32 %s9, 4
    %s15 = int_to_ptr.hbm [resolvable:$true] %s14
    %s16 = sshll.u32 %s2, 4
    %s17 = int_to_ptr.hbm [resolvable:$true] %s16
    %21 = sst [smem:[#allocation6]] 128
    %s22 = scalar_lea.smem [#allocation6], 1
    %23 = sst [smem:[%s22]] 16
    %s24 = scalar_lea.smem [#allocation6], 2
    %25 = sst [smem:[%s24]] 1
    %27 = dma.general %s15, 32, %s17, [#allocation2], [#allocation5], [#allocation6], 0, 0
    %s28 = smul.u32 2, 1
    %s29 = smul.u32 %s28, 1
    %s30 = sshll.u32 %s29, 4
    %31 = dma.done [#allocation2], %s30
  %32 = vsyncmov [#allocation2]
  %s33 = vpop.sfrf %32
  %p34 = scmp.eq.s32.totalorder %s33, 0
  %p35 = pneg %p34
  %37 = shalt.err (%p35)

</llo_original>
